<compile_context>
chip_gen: v5e
topology: v5e:2x2
jax: 0.10.0
libtpu: 0.0.40
codegen_flags: <defaults>
</compile_context>

<pallas_src>
import jax
import jax.numpy as jnp
from jax.experimental import pallas as pl
from jax.experimental.pallas import tpu as pltpu


HIDDEN = 128
TILE_M_MAX = 2048          # large tiles amortize per-grid-step overhead
VMEM_TILE_BUDGET = 16 * 1024 * 1024   # conservative vs v7x's 32 MiB scoped default
VPU_LAYER1_MAX_K = 16      # below this Cin, do layer 1 as rank-1 updates on the VPU


def _round_up(x, m):
    return (x + m - 1) // m * m


def _make_mlp_kernel(cin):
    """Kernel body; `cin` is static so the layer-1 strategy is chosen at trace time."""
    use_vpu_layer1 = cin < VPU_LAYER1_MAX_K

    def mlp_kernel(x_ref, w1_ref, b1_ref, w2_ref, b2_ref, w3_ref, b3_ref, o_ref):
        x = x_ref[...]                                    # (tile_m, cin) f32
        # ---- layer 1: Linear(Cin, 128) ----
        if use_vpu_layer1:
            # tiny-K contraction on the VPU: sum_k x[:, k] (outer) w1[k, :]
            h = x[:, 0:1] * w1_ref[0:1, :]
            for k in range(1, cin):
                h = h + x[:, k:k + 1] * w1_ref[k:k + 1, :]
        else:
            h = jnp.dot(x, w1_ref[...], preferred_element_type=jnp.float32)
        h = jnp.maximum(h + b1_ref[...], 0.0)             # + bias, ReLU
        # ---- layer 2: Linear(128, 128) + ReLU ----
        h = jnp.dot(h, w2_ref[...], preferred_element_type=jnp.float32)
        h = jnp.maximum(h + b2_ref[...], 0.0)
        # ---- layer 3: Linear(128, Cout) ----
        out = jnp.dot(h, w3_ref[...], preferred_element_type=jnp.float32)
        o_ref[...] = (out + b3_ref[...]).astype(o_ref.dtype)

    return mlp_kernel


@jax.jit
def mlp_pallas(x, w1, b1, w2, b2, w3, b3):
    """x: [N, Cin]. Weights [in, out], biases [1, out]. Returns [N, Cout] f32."""
    x = x.astype(jnp.float32)
    w1 = w1.astype(jnp.float32); b1 = b1.astype(jnp.float32)
    w2 = w2.astype(jnp.float32); b2 = b2.astype(jnp.float32)
    w3 = w3.astype(jnp.float32); b3 = b3.astype(jnp.float32)

    n, cin = x.shape
    cout = w3.shape[1]

    # ---- balanced row tiling (all static Python math at trace time) ----
    # VMEM cap: double-buffered x + out tiles must stay well under budget (v7x).
    row_bytes = 4 * (cin + cout)
    tile_cap = max(8, (VMEM_TILE_BUDGET // (2 * row_bytes)) // 8 * 8)
    tile_m_max = min(TILE_M_MAX, tile_cap)

    num_tiles = pl.cdiv(n, tile_m_max)
    if num_tiles == 1 and n >= 256:
        num_tiles = 2              # give both v7x TensorCores work
    if num_tiles > 1 and num_tiles % 2 == 1:
        num_tiles += 1             # even tile count -> balanced megacore split
    tile_m = min(tile_m_max, max(8, _round_up(pl.cdiv(n, num_tiles), 8)))
    grid_m = pl.cdiv(n, tile_m)    # last tile may be partial; Pallas masks it

    # weights/biases: constant index_map -> VMEM-resident across grid steps
    const2 = lambda i: (0, 0)
    in_specs = [
        pl.BlockSpec((tile_m, cin), lambda i: (i, 0)),   # x tile (streamed, unpadded)
        pl.BlockSpec((cin, HIDDEN), const2),             # w1
        pl.BlockSpec((1, HIDDEN), const2),               # b1
        pl.BlockSpec((HIDDEN, HIDDEN), const2),          # w2
        pl.BlockSpec((1, HIDDEN), const2),               # b2
        pl.BlockSpec((HIDDEN, cout), const2),            # w3
        pl.BlockSpec((1, cout), const2),                 # b3
    ]
    out_spec = pl.BlockSpec((tile_m, cout), lambda i: (i, 0))

    flops = 2 * n * (cin * HIDDEN + HIDDEN * HIDDEN + HIDDEN * cout)
    bytes_accessed = 4 * (
        n * cin                                   # x read
        + cin * HIDDEN + HIDDEN                   # w1, b1
        + HIDDEN * HIDDEN + HIDDEN                # w2, b2
        + HIDDEN * cout + cout                    # w3, b3
        + n * cout                                # output write
    )

    return pl.pallas_call(
        _make_mlp_kernel(cin),
        out_shape=jax.ShapeDtypeStruct((n, cout), jnp.float32),
        grid=(grid_m,),
        in_specs=in_specs,
        out_specs=out_spec,
        compiler_params=pltpu.CompilerParams(
            dimension_semantics=("parallel",),
        ),
        cost_estimate=pl.CostEstimate(
            flops=flops, transcendentals=0, bytes_accessed=bytes_accessed
        ),
    )(x, w1, b1, w2, b2, w3, b3)


def mlp_apply(x, *params):
    """nn.Linear semantics: apply over the last dim of arbitrary leading dims."""
    lead = x.shape[:-1]
    out2 = mlp_pallas(x.reshape(-1, x.shape[-1]), *params)
    return out2.reshape(*lead, out2.shape[-1])


def init_params(key, channels_in, channels_out, hidden=HIDDEN):
    ks = jax.random.split(key, 6)
    w1 = jax.random.normal(ks[0], (channels_in, hidden), jnp.float32) / jnp.sqrt(channels_in)
    b1 = jax.random.normal(ks[1], (1, hidden), jnp.float32) * 0.01
    w2 = jax.random.normal(ks[2], (hidden, hidden), jnp.float32) / jnp.sqrt(hidden)
    b2 = jax.random.normal(ks[3], (1, hidden), jnp.float32) * 0.01
    w3 = jax.random.normal(ks[4], (hidden, channels_out), jnp.float32) / jnp.sqrt(hidden)
    b3 = jax.random.normal(ks[5], (1, channels_out), jnp.float32) * 0.01
    return w1, b1, w2, b2, w3, b3


def mlp_ref_f32(x, w1, b1, w2, b2, w3, b3):
    h = jnp.maximum(x @ w1 + b1, 0.0)
    h = jnp.maximum(h @ w2 + b2, 0.0)
    return h @ w3 + b3


if __name__ == "__main__":
    key = jax.random.PRNGKey(0)
    kx, kp = jax.random.split(key)

    channels_in, channels_out = 4, 32
    batch, seq = 2, 8  # nn.Linear applies over the last dim of arbitrary leading dims

    x3 = jax.random.normal(kx, (batch, seq, channels_in), jnp.float32)
    params = init_params(kp, channels_in, channels_out)

    out = mlp_apply(x3, *params)
    jax.block_until_ready(out)

    assert out.shape == (batch, seq, channels_out)

    # reference check vs full-f32 math (kernel is f32 end-to-end now)
    ref = mlp_ref_f32(x3.reshape(-1, channels_in), *params).reshape(
        batch, seq, channels_out
    )
    assert jnp.allclose(out, ref, atol=2e-2, rtol=2e-2)

    print("KERNEL_OK")
</pallas_src>

<mosaic_0001>
module attributes {stable_mosaic.version = 11 : i64} {
  func.func @mlp_kernel(%arg0: i32, %arg1: memref<16x4xf32, #tpu.memory_space<vmem>>, %arg2: memref<4x128xf32, #tpu.memory_space<vmem>>, %arg3: memref<1x128xf32, #tpu.memory_space<vmem>>, %arg4: memref<128x128xf32, #tpu.memory_space<vmem>>, %arg5: memref<1x128xf32, #tpu.memory_space<vmem>>, %arg6: memref<128x32xf32, #tpu.memory_space<vmem>>, %arg7: memref<1x32xf32, #tpu.memory_space<vmem>>, %arg8: memref<16x32xf32, #tpu.memory_space<vmem>>) attributes {dimension_semantics = [#tpu.dimension_semantics<parallel>], iteration_bounds = array<i64: 1>, scalar_prefetch = 0 : i64, scratch_operands = 0 : i64, tpu.core_type = #tpu.core_type<tc>, window_params = [{transform_indices = @transform_0, window_bounds = array<i64: 16, 4>}, {pipeline_mode = #tpu.pipeline_mode<synchronous>, transform_indices = @transform_1, window_bounds = array<i64: 4, 128>}, {pipeline_mode = #tpu.pipeline_mode<synchronous>, transform_indices = @transform_2, window_bounds = array<i64: 1, 128>}, {pipeline_mode = #tpu.pipeline_mode<synchronous>, transform_indices = @transform_3, window_bounds = array<i64: 128, 128>}, {pipeline_mode = #tpu.pipeline_mode<synchronous>, transform_indices = @transform_4, window_bounds = array<i64: 1, 128>}, {pipeline_mode = #tpu.pipeline_mode<synchronous>, transform_indices = @transform_5, window_bounds = array<i64: 128, 32>}, {pipeline_mode = #tpu.pipeline_mode<synchronous>, transform_indices = @transform_6, window_bounds = array<i64: 1, 32>}, {transform_indices = @transform_7, window_bounds = array<i64: 16, 32>}]} {
    %c0 = arith.constant 0 : index
    %c0_0 = arith.constant 0 : index
    %0 = vector.load %arg1[%c0, %c0_0] : memref<16x4xf32, #tpu.memory_space<vmem>>, vector<16x4xf32>
    %1 = vector.extract_strided_slice %0 {offsets = [0, 0], sizes = [16, 1], strides = [1, 1]} : vector<16x4xf32> to vector<16x1xf32>
    %c0_1 = arith.constant 0 : index
    %c0_2 = arith.constant 0 : index
    %2 = vector.load %arg2[%c0_1, %c0_2] : memref<4x128xf32, #tpu.memory_space<vmem>>, vector<1x128xf32>
    %3 = vector.broadcast %1 : vector<16x1xf32> to vector<16x128xf32>
    %4 = vector.broadcast %2 : vector<1x128xf32> to vector<16x128xf32>
    %5 = arith.mulf %3, %4 : vector<16x128xf32>
    %6 = vector.extract_strided_slice %0 {offsets = [0, 1], sizes = [16, 1], strides = [1, 1]} : vector<16x4xf32> to vector<16x1xf32>
    %c1 = arith.constant 1 : index
    %c0_3 = arith.constant 0 : index
    %7 = vector.load %arg2[%c1, %c0_3] : memref<4x128xf32, #tpu.memory_space<vmem>>, vector<1x128xf32>
    %8 = vector.broadcast %6 : vector<16x1xf32> to vector<16x128xf32>
    %9 = vector.broadcast %7 : vector<1x128xf32> to vector<16x128xf32>
    %10 = arith.mulf %8, %9 : vector<16x128xf32>
    %11 = arith.addf %5, %10 : vector<16x128xf32>
    %12 = vector.extract_strided_slice %0 {offsets = [0, 2], sizes = [16, 1], strides = [1, 1]} : vector<16x4xf32> to vector<16x1xf32>
    %c2 = arith.constant 2 : index
    %c0_4 = arith.constant 0 : index
    %13 = vector.load %arg2[%c2, %c0_4] : memref<4x128xf32, #tpu.memory_space<vmem>>, vector<1x128xf32>
    %14 = vector.broadcast %12 : vector<16x1xf32> to vector<16x128xf32>
    %15 = vector.broadcast %13 : vector<1x128xf32> to vector<16x128xf32>
    %16 = arith.mulf %14, %15 : vector<16x128xf32>
    %17 = arith.addf %11, %16 : vector<16x128xf32>
    %18 = vector.extract_strided_slice %0 {offsets = [0, 3], sizes = [16, 1], strides = [1, 1]} : vector<16x4xf32> to vector<16x1xf32>
    %c3 = arith.constant 3 : index
    %c0_5 = arith.constant 0 : index
    %19 = vector.load %arg2[%c3, %c0_5] : memref<4x128xf32, #tpu.memory_space<vmem>>, vector<1x128xf32>
    %20 = vector.broadcast %18 : vector<16x1xf32> to vector<16x128xf32>
    %21 = vector.broadcast %19 : vector<1x128xf32> to vector<16x128xf32>
    %22 = arith.mulf %20, %21 : vector<16x128xf32>
    %23 = arith.addf %17, %22 : vector<16x128xf32>
    %c0_6 = arith.constant 0 : index
    %c0_7 = arith.constant 0 : index
    %24 = vector.load %arg3[%c0_6, %c0_7] : memref<1x128xf32, #tpu.memory_space<vmem>>, vector<1x128xf32>
    %25 = vector.broadcast %24 : vector<1x128xf32> to vector<16x128xf32>
    %26 = arith.addf %23, %25 : vector<16x128xf32>
    %cst = arith.constant 0.000000e+00 : f32
    %27 = vector.broadcast %cst : f32 to vector<16x128xf32>
    %28 = arith.maximumf %26, %27 : vector<16x128xf32>
    %c0_8 = arith.constant 0 : index
    %c0_9 = arith.constant 0 : index
    %29 = vector.load %arg4[%c0_8, %c0_9] : memref<128x128xf32, #tpu.memory_space<vmem>>, vector<128x128xf32>
    %cst_10 = arith.constant dense<0.000000e+00> : vector<16x128xf32>
    %30 = tpu.matmul %28, %29, %cst_10 {dimension_numbers = #tpu.dot_dimension_numbers<[1], [0], [0], [1], [0, 0, 1, 1], [], []>} : vector<16x128xf32>, vector<128x128xf32>, vector<16x128xf32> -> vector<16x128xf32>
    %c0_11 = arith.constant 0 : index
    %c0_12 = arith.constant 0 : index
    %31 = vector.load %arg5[%c0_11, %c0_12] : memref<1x128xf32, #tpu.memory_space<vmem>>, vector<1x128xf32>
    %32 = vector.broadcast %31 : vector<1x128xf32> to vector<16x128xf32>
    %33 = arith.addf %30, %32 : vector<16x128xf32>
    %cst_13 = arith.constant 0.000000e+00 : f32
    %34 = vector.broadcast %cst_13 : f32 to vector<16x128xf32>
    %35 = arith.maximumf %33, %34 : vector<16x128xf32>
    %c0_14 = arith.constant 0 : index
    %c0_15 = arith.constant 0 : index
    %36 = vector.load %arg6[%c0_14, %c0_15] : memref<128x32xf32, #tpu.memory_space<vmem>>, vector<128x32xf32>
    %cst_16 = arith.constant dense<0.000000e+00> : vector<16x32xf32>
    %37 = tpu.matmul %35, %36, %cst_16 {dimension_numbers = #tpu.dot_dimension_numbers<[1], [0], [0], [1], [0, 0, 1, 1], [], []>} : vector<16x128xf32>, vector<128x32xf32>, vector<16x32xf32> -> vector<16x32xf32>
    %c0_17 = arith.constant 0 : index
    %c0_18 = arith.constant 0 : index
    %38 = vector.load %arg7[%c0_17, %c0_18] : memref<1x32xf32, #tpu.memory_space<vmem>>, vector<1x32xf32>
    %39 = vector.broadcast %38 : vector<1x32xf32> to vector<16x32xf32>
    %40 = arith.addf %37, %39 : vector<16x32xf32>
    %c0_19 = arith.constant 0 : index
    %c0_20 = arith.constant 0 : index
    %41 = vector.load %arg8[%c0_19, %c0_20] : memref<16x32xf32, #tpu.memory_space<vmem>>, vector<16x32xf32>
    tpu.vector_store %arg8[%c0_19, %c0_20], %40 {strides = array<i32>} : memref<16x32xf32, #tpu.memory_space<vmem>>, vector<16x32xf32>,
    return
  }
  func.func @transform_0(%arg0: i32) -> (i32, i32) {
    %c0_i32 = arith.constant 0 : i32
    %c0_i32_0 = arith.constant 0 : i32
    return %arg0, %c0_i32 : i32, i32
  }
  func.func @transform_1(%arg0: i32) -> (i32, i32) {
    %c0_i32 = arith.constant 0 : i32
    %c0_i32_0 = arith.constant 0 : i32
    %c0_i32_1 = arith.constant 0 : i32
    return %c0_i32, %c0_i32_0 : i32, i32
  }
  func.func @transform_2(%arg0: i32) -> (i32, i32) {
    %c0_i32 = arith.constant 0 : i32
    %c0_i32_0 = arith.constant 0 : i32
    %c0_i32_1 = arith.constant 0 : i32
    return %c0_i32, %c0_i32_0 : i32, i32
  }
  func.func @transform_3(%arg0: i32) -> (i32, i32) {
    %c0_i32 = arith.constant 0 : i32
    %c0_i32_0 = arith.constant 0 : i32
    %c0_i32_1 = arith.constant 0 : i32
    return %c0_i32, %c0_i32_0 : i32, i32
  }
  func.func @transform_4(%arg0: i32) -> (i32, i32) {
    %c0_i32 = arith.constant 0 : i32
    %c0_i32_0 = arith.constant 0 : i32
    %c0_i32_1 = arith.constant 0 : i32
    return %c0_i32, %c0_i32_0 : i32, i32
  }
  func.func @transform_5(%arg0: i32) -> (i32, i32) {
    %c0_i32 = arith.constant 0 : i32
    %c0_i32_0 = arith.constant 0 : i32
    %c0_i32_1 = arith.constant 0 : i32
    return %c0_i32, %c0_i32_0 : i32, i32
  }
  func.func @transform_6(%arg0: i32) -> (i32, i32) {
    %c0_i32 = arith.constant 0 : i32
    %c0_i32_0 = arith.constant 0 : i32
    %c0_i32_1 = arith.constant 0 : i32
    return %c0_i32, %c0_i32_0 : i32, i32
  }
  func.func @transform_7(%arg0: i32) -> (i32, i32) {
    %c0_i32 = arith.constant 0 : i32
    %c0_i32_0 = arith.constant 0 : i32
    return %arg0, %c0_i32 : i32, i32
  }
}

</mosaic_0001>

<llo_original>
// kernel: mlp_pallas.1
$region0: #{mlp_pallas.1}
  #allocation0 [shape = 'u32[]', space=smem, size = 0x4, offset = 0x4, fixed_abs, tag = 'smem constant byte address 0x4 - core index']
  #allocation1 [shape = 'u32[72,128]{1,0:T(1,128)}', space=vmem, size = 0x9000, scoped, tag = 'internal scratch']
  %s0 = inlined_call_operand.vmem [shape: f32[16,4], index: 0, kind: input, shape index: {}]
  %s1 = inlined_call_operand.vmem [shape: f32[4,128], index: 1, kind: input, shape index: {}]
  %s2 = inlined_call_operand.vmem [shape: f32[1,128], index: 2, kind: input, shape index: {}]
  %s3 = inlined_call_operand.vmem [shape: f32[128,128], index: 3, kind: input, shape index: {}]
  %s4 = inlined_call_operand.vmem [shape: f32[1,128], index: 4, kind: input, shape index: {}]
  %s5 = inlined_call_operand.vmem [shape: f32[128,32], index: 5, kind: input, shape index: {}]
  %s6 = inlined_call_operand.vmem [shape: f32[1,32], index: 6, kind: input, shape index: {}]
  %s7 = inlined_call_operand.hbm [shape: f32[16,32], index: 7, kind: output, shape index: {}]
  %s8 = sld [smem:[#allocation0]]
  $region38: #{mlp_pallas.1} parent=0
    _
  %s10 = ssub.s32 1, %s8
  %s11 = scalar_select 0, %s10, %s8
  $region1: #{mlp_pallas.1} parent=0
    #allocation2 [shape = 'u8[8192]{0}', space=vmem, size = 0x2000, scoped, tag = 'output window, operand 0, single buffered']
    #allocation3 [shape = 's32[1]{0}', space=sflag, size = 0x4, scoped, tag = 'scoped memory for mlp_pallas.1']
    %12 = vsyncpa [#allocation3], 0
    // Predicated region
    $region2: #{mlp_pallas.1} parent=1 // pred_check
      _
    $region3: #{mlp_pallas.1} parent=1 // pred_check_branch
      %14 = sbr.rel (0) target = $region5
    $region4: #{mlp_pallas.1} parent=1 // pred_region
      _
    $region5: #{mlp_pallas.1} parent=1 // pred_fallthru
      _
    // Predicated region
    $region6: #{mlp_pallas.1} parent=1 // pred_check
      _
    $region7: #{mlp_pallas.1} parent=1 // pred_check_branch
      %16 = sbr.rel (0) target = $region9
    $region8: #{mlp_pallas.1} parent=1 // pred_region
      _
    $region9: #{mlp_pallas.1} parent=1 // pred_fallthru
      _
    // Predicated region
    $region10: #{mlp_pallas.1} parent=1 // pred_check
      _
    $region11: #{mlp_pallas.1} parent=1 // pred_check_branch
      %18 = sbr.rel (0) target = $region13
    $region12: #{mlp_pallas.1} parent=1 // pred_region
      _
    $region13: #{mlp_pallas.1} parent=1 // pred_fallthru
      _
    // Predicated region
    $region14: #{mlp_pallas.1} parent=1 // pred_check
      _
    $region15: #{mlp_pallas.1} parent=1 // pred_check_branch
      %20 = sbr.rel (0) target = $region17
    $region16: #{mlp_pallas.1} parent=1 // pred_region
      _
    $region17: #{mlp_pallas.1} parent=1 // pred_fallthru
      _
    // Predicated region
    $region18: #{mlp_pallas.1} parent=1 // pred_check
      _
    $region19: #{mlp_pallas.1} parent=1 // pred_check_branch
      %22 = sbr.rel (0) target = $region21
    $region20: #{mlp_pallas.1} parent=1 // pred_region
      _
    $region21: #{mlp_pallas.1} parent=1 // pred_fallthru
      _
    // Predicated region
    $region22: #{mlp_pallas.1} parent=1 // pred_check
      _
    $region23: #{mlp_pallas.1} parent=1 // pred_check_branch
      %24 = sbr.rel (0) target = $region25
    $region24: #{mlp_pallas.1} parent=1 // pred_region
      _
    $region25: #{mlp_pallas.1} parent=1 // pred_fallthru
      _
    // Predicated region
    $region26: #{mlp_pallas.1} parent=1 // pred_check
      _
    $region27: #{mlp_pallas.1} parent=1 // pred_check_branch
      %26 = sbr.rel (0) target = $region29
    $region28: #{mlp_pallas.1} parent=1 // pred_region
      _
    $region29: #{mlp_pallas.1} parent=1 // pred_fallthru
      _
    %v27 = vld [vmem:[%s0] sm:$0xff]
    %v28 = vld [vmem:[%s0 + $0x8] sm:$0xff]
    %v29 = vld [vmem:[%s1] sm:$0x1]
    %31 = vset.pattern.permute.xlu0 0
    %32 = vperm.xlu0 %31, %v27
    %v33 = vpop.permute.xlu0 %32
    %36 = vset.pattern.permute.xlu0 0
    %37 = vperm.xlu0 %36, %v28
    %v38 = vpop.permute.xlu0 %37
    %v40 = vperm.slane %v29, 0
    %v41 = vmul.f32 %v33, %v40
    %v42 = vmul.f32 %v38, %v40
    %v43 = vld [vmem:[%s1 + $0x1] sm:$0x1]
    %44 = vset.pattern.permute.xlu0 1
    %45 = vperm.xlu0 %44, %v27
    %v46 = vpop.permute.xlu0 %45
    %48 = vset.pattern.permute.xlu0 1
    %49 = vperm.xlu0 %48, %v28
    %v50 = vpop.permute.xlu0 %49
    %v52 = vperm.slane %v43, 0
    %v53 = vmul.f32 %v46, %v52
    %v54 = vmul.f32 %v50, %v52
    %v55 = vadd.f32 %v41, %v53
    %v56 = vadd.f32 %v42, %v54
    %v57 = vld [vmem:[%s1 + $0x2] sm:$0x1]
    %58 = vset.pattern.permute.xlu0 2
    %59 = vperm.xlu0 %58, %v27
    %v60 = vpop.permute.xlu0 %59
    %62 = vset.pattern.permute.xlu0 2
    %63 = vperm.xlu0 %62, %v28
    %v64 = vpop.permute.xlu0 %63
    %v66 = vperm.slane %v57, 0
    %v67 = vmul.f32 %v60, %v66
    %v68 = vmul.f32 %v64, %v66
    %v69 = vadd.f32 %v55, %v67
    %v70 = vadd.f32 %v56, %v68
    %v71 = vld [vmem:[%s1 + $0x3] sm:$0x1]
    %72 = vset.pattern.permute.xlu0 3
    %73 = vperm.xlu0 %72, %v27
    %v74 = vpop.permute.xlu0 %73
    %76 = vset.pattern.permute.xlu0 3
    %77 = vperm.xlu0 %76, %v28
    %v78 = vpop.permute.xlu0 %77
    %v80 = vperm.slane %v71, 0
    %v81 = vmul.f32 %v74, %v80
    %v82 = vmul.f32 %v78, %v80
    %v83 = vadd.f32 %v69, %v81
    %v84 = vadd.f32 %v70, %v82
    %v85 = vld [vmem:[%s2] sm:$0x1]
    %v87 = vperm.slane %v85, 0
    %v89 = vadd.f32 %v83, %v87
    %v90 = vadd.f32 %v84, %v87
    %v91 = vmax.f32 %v89, 0.0
    %v92 = vmax.f32 %v90, 0.0
    %v93 = vld [vmem:[%s3] sm:$0xff]
    %v94 = vld [vmem:[%s3 + $0x8] sm:$0xff]
    %v95 = vld [vmem:[%s3 + $0x10] sm:$0xff]
    %v96 = vld [vmem:[%s3 + $0x18] sm:$0xff]
    %v97 = vld [vmem:[%s3 + $0x20] sm:$0xff]
    %v98 = vld [vmem:[%s3 + $0x28] sm:$0xff]
    %v99 = vld [vmem:[%s3 + $0x30] sm:$0xff]
    %v100 = vld [vmem:[%s3 + $0x38] sm:$0xff]
    %v101 = vld [vmem:[%s3 + $0x40] sm:$0xff]
    %v102 = vld [vmem:[%s3 + $0x48] sm:$0xff]
    %v103 = vld [vmem:[%s3 + $0x50] sm:$0xff]
    %v104 = vld [vmem:[%s3 + $0x58] sm:$0xff]
    %v105 = vld [vmem:[%s3 + $0x60] sm:$0xff]
    %v106 = vld [vmem:[%s3 + $0x68] sm:$0xff]
    %v107 = vld [vmem:[%s3 + $0x70] sm:$0xff]
    %v108 = vld [vmem:[%s3 + $0x78] sm:$0xff]
    %v109 = vld [vmem:[%s4] sm:$0x1]
    %v111 = vperm.slane %v109, 0
    %113 = vmatpush.msra.mxu0 %v108
    %114 = vmatpush.msra.mxu0 %v107
    %115 = vmatpush.msra.mxu0 %v106
    %116 = vmatpush.msra.mxu0 %v105
    %117 = vmatpush.msra.mxu0 %v104
    %118 = vmatpush.msra.mxu0 %v103
    %119 = vmatpush.msra.mxu0 %v102
    %120 = vmatpush.msra.mxu0 %v101
    %121 = vmatpush.msra.mxu0 %v100
    %122 = vmatpush.msra.mxu0 %v99
    %123 = vmatpush.msra.mxu0 %v98
    %124 = vmatpush.msra.mxu0 %v97
    %125 = vmatpush.msra.mxu0 %v96
    %126 = vmatpush.msra.mxu0 %v95
    %127 = vmatpush.msra.mxu0 %v94
    %128 = vmatpush.msra.mxu0 %v93
    %129 = vmatmul.f32.gmra.mxu0 %v91
    %v130 = vpop.f32.mrf.mxu0
    %v131 = vadd.f32 %v111, %v130
    %132 = vmatmul.f32.gmra.mxu0 %v92
    %v133 = vpop.f32.mrf.mxu0
    %v134 = vadd.f32 %v111, %v133
    %135 = vdwg.mxu0
    %v136 = vmax.f32 %v131, 0.0
    %v137 = vmax.f32 %v134, 0.0
    %v138 = vld [vmem:[%s5] sm:$0xff]
    %v139 = vld [vmem:[%s5 + $0x8] sm:$0xff]
    %v140 = vld [vmem:[%s5 + $0x10] sm:$0xff]
    %v141 = vld [vmem:[%s5 + $0x18] sm:$0xff]
    %v142 = vld [vmem:[%s5 + $0x20] sm:$0xff]
    %v143 = vld [vmem:[%s5 + $0x28] sm:$0xff]
    %v144 = vld [vmem:[%s5 + $0x30] sm:$0xff]
    %v145 = vld [vmem:[%s5 + $0x38] sm:$0xff]
    %v146 = vld [vmem:[%s5 + $0x40] sm:$0xff]
    %v147 = vld [vmem:[%s5 + $0x48] sm:$0xff]
    %v148 = vld [vmem:[%s5 + $0x50] sm:$0xff]
    %v149 = vld [vmem:[%s5 + $0x58] sm:$0xff]
    %v150 = vld [vmem:[%s5 + $0x60] sm:$0xff]
    %v151 = vld [vmem:[%s5 + $0x68] sm:$0xff]
    %v152 = vld [vmem:[%s5 + $0x70] sm:$0xff]
    %v153 = vld [vmem:[%s5 + $0x78] sm:$0xff]
    %v154 = vld [vmem:[%s6] sm:$0x1]
    %v156 = vperm.slane %v154, 0
    %158 = vmatpush.msra.mxu0 %v153
    %159 = vmatpush.msra.mxu0 %v152
    %160 = vmatpush.msra.mxu0 %v151
    %161 = vmatpush.msra.mxu0 %v150
    %162 = vmatpush.msra.mxu0 %v149
    %163 = vmatpush.msra.mxu0 %v148
    %164 = vmatpush.msra.mxu0 %v147
    %165 = vmatpush.msra.mxu0 %v146
    %166 = vmatpush.msra.mxu0 %v145
    %167 = vmatpush.msra.mxu0 %v144
    %168 = vmatpush.msra.mxu0 %v143
    %169 = vmatpush.msra.mxu0 %v142
    %170 = vmatpush.msra.mxu0 %v141
    %171 = vmatpush.msra.mxu0 %v140
    %172 = vmatpush.msra.mxu0 %v139
    %173 = vmatpush.msra.mxu0 %v138
    %174 = vmatmul.f32.gmra.mxu0 %v136
    %v175 = vpop.f32.mrf.mxu0
    %v176 = vadd.f32 %v156, %v175
    %177 = vmatmul.f32.gmra.mxu0 %v137
    %v178 = vpop.f32.mrf.mxu0
    %v179 = vadd.f32 %v156, %v178
    %180 = vdwg.mxu0
    %vm181 = vcmask 261120
    %182 = vst.msk [vmem:[#allocation2] sm:$0xff] %vm181, %v176
    %183 = vst.msk [vmem:[#allocation2 + $0x8] sm:$0xff] %vm181, %v179
    // Predicated region
    $region30: #{mlp_pallas.1} parent=1 // pred_check
      _
    $region31: #{mlp_pallas.1} parent=1 // pred_check_branch
      %185 = sbr.rel (0) target = $region33
    $region32: #{mlp_pallas.1} parent=1 // pred_region
      %187 = vsyncadd [#allocation3], 0
      %s188 = sshll.u32 [#allocation2], 4
      %s189 = int_to_ptr.vmem [resolvable:$true] %s188
      %s190 = sshll.u32 %s7, 4
      %s191 = int_to_ptr.hbm [resolvable:$true] %s190
      %196 = dma.vmem_to_hbm [thread:$0]  %s189, 256, %s191, [#allocation3], 128, 128, 8
    $region33: #{mlp_pallas.1} parent=1 // pred_fallthru
      _
    // Predicated region
    $region34: #{mlp_pallas.1} parent=1 // pred_check
      _
    $region35: #{mlp_pallas.1} parent=1 // pred_check_branch
      %198 = sbr.rel (0) target = $region37
    $region36: #{mlp_pallas.1} parent=1 // pred_region
      %200 = dma.done [#allocation3], 256
    $region37: #{mlp_pallas.1} parent=1 // pred_fallthru
      _
    %201 = vsyncpa [#allocation3], 1

</llo_original>
